<compile_context>
chip_gen: v6e
topology: v6e:2x2x1
jax: 0.10.0
libtpu: 0.0.40
codegen_flags: <defaults>
</compile_context>

<pallas_src>
import functools

import jax
import jax.numpy as jnp
from jax import lax
from jax.experimental import pallas as pl
from jax.experimental.pallas import tpu as pltpu


LN_EPS = 1e-6  # timm ViT LayerNorm eps


# ----------------------------------------------------------------------------- #
# In-kernel math helpers (f32 elementwise, bf16 only at MXU boundaries)
# ----------------------------------------------------------------------------- #
def _layernorm(x, g, b, eps=LN_EPS):
    mu = jnp.mean(x, axis=-1, keepdims=True)
    xc = x - mu
    var = jnp.mean(xc * xc, axis=-1, keepdims=True)   # biased var (torch LayerNorm)
    return xc * lax.rsqrt(var + eps) * g + b


def _gelu_tanh(x):
    c = 0.7978845608028654  # sqrt(2/pi)
    return 0.5 * x * (1.0 + jnp.tanh(c * (x + 0.044715 * x * x * x)))


# ----------------------------------------------------------------------------- #
# Pallas kernels
# ----------------------------------------------------------------------------- #
def _src_embed_kernel(feat_ref, fcw_ref, fcb_ref, pw_ref, pb_ref, o_ref):
    # out = (feat @ fc_w + fc_b) @ patch_w + patch_b    (row-local, row-tiled)
    h = jnp.dot(feat_ref[...].astype(jnp.bfloat16), fcw_ref[...],
                preferred_element_type=jnp.float32) + fcb_ref[...]
    z = jnp.dot(h.astype(jnp.bfloat16), pw_ref[...],
                preferred_element_type=jnp.float32) + pb_ref[...]
    o_ref[...] = z


def _attn_block_kernel(x_ref, g_ref, b_ref, qkvw_ref, qkvb_ref, pw_ref, pb_ref,
                       o_ref, *, num_heads):
    # out = x + Proj(MHSA(LN(x)))   -- fully fused, intermediates in VMEM
    x = x_ref[...]                                           # [S, D] f32
    D = x.shape[-1]
    Dh = D // num_heads
    scale = Dh ** -0.5

    y = _layernorm(x, g_ref[...], b_ref[...]).astype(jnp.bfloat16)
    qkv = jnp.dot(y, qkvw_ref[...],
                  preferred_element_type=jnp.float32) + qkvb_ref[...]   # [S, 3D] f32

    out = x + pb_ref[...]                                    # residual + proj bias
    for h in range(num_heads):
        q = qkv[:, h * Dh:(h + 1) * Dh]
        k = qkv[:, D + h * Dh: D + (h + 1) * Dh]
        v = qkv[:, 2 * D + h * Dh: 2 * D + (h + 1) * Dh]

        # contract last axis of both operands -> no k transpose
        s = lax.dot_general(q.astype(jnp.bfloat16), k.astype(jnp.bfloat16),
                            (((1,), (1,)), ((), ())),
                            preferred_element_type=jnp.float32) * scale  # [S, S]
        m = jnp.max(s, axis=-1, keepdims=True)
        p = jnp.exp(s - m)
        inv = pl.reciprocal(jnp.sum(p, axis=-1, keepdims=True), approx=True)
        p = p * inv

        o_h = jnp.dot(p.astype(jnp.bfloat16), v.astype(jnp.bfloat16),
                      preferred_element_type=jnp.float32)                # [S, Dh]
        # accumulate this head's projection (== concat-heads @ proj_w)
        out = out + jnp.dot(o_h.astype(jnp.bfloat16),
                            pw_ref[h * Dh:(h + 1) * Dh, :],
                            preferred_element_type=jnp.float32)
    o_ref[...] = out


def _mlp_block_kernel(x_ref, g_ref, b_ref, w1_ref, b1_ref, w2_ref, b2_ref, o_ref):
    # out = x + fc2(GELU(fc1(LN(x))))   (row-local, row-tiled)
    x = x_ref[...]
    y = _layernorm(x, g_ref[...], b_ref[...]).astype(jnp.bfloat16)
    h = jnp.dot(y, w1_ref[...], preferred_element_type=jnp.float32) + b1_ref[...]
    h = _gelu_tanh(h).astype(jnp.bfloat16)
    o = jnp.dot(h, w2_ref[...], preferred_element_type=jnp.float32) + b2_ref[...]
    o_ref[...] = x + o


def _final_head_kernel(x_ref, g_ref, b_ref, hw_ref, hb_ref, o_ref):
    # out = LN(x) @ head_w + head_b   (row-local, row-tiled)
    y = _layernorm(x_ref[...], g_ref[...], b_ref[...]).astype(jnp.bfloat16)
    o_ref[...] = jnp.dot(y, hw_ref[...],
                         preferred_element_type=jnp.float32) + hb_ref[...]


# ----------------------------------------------------------------------------- #
# Pallas wrappers
# ----------------------------------------------------------------------------- #
def _row_tile(rows, target=256):
    # full-extent block for short sequences (always legal), 8-aligned 256-row
    # tiles otherwise (ragged tail masked by Pallas)
    return rows if rows <= target else target


def src_embed_pallas(feat, fc_w, fc_b, patch_w, patch_b):
    M, K = feat.shape
    H = fc_w.shape[1]
    D = patch_w.shape[1]
    TM = _row_tile(M)
    return pl.pallas_call(
        _src_embed_kernel,
        out_shape=jax.ShapeDtypeStruct((M, D), jnp.float32),
        grid=(pl.cdiv(M, TM),),
        in_specs=[
            pl.BlockSpec((TM, K), lambda i: (i, 0)),
            pl.BlockSpec((K, H), lambda i: (0, 0)),
            pl.BlockSpec((1, H), lambda i: (0, 0)),
            pl.BlockSpec((H, D), lambda i: (0, 0)),
            pl.BlockSpec((1, D), lambda i: (0, 0)),
        ],
        out_specs=pl.BlockSpec((TM, D), lambda i: (i, 0)),
        compiler_params=pltpu.CompilerParams(dimension_semantics=("parallel",)),
    )(feat, fc_w, fc_b, patch_w, patch_b)


def attn_block_pallas(x, p, num_heads):
    S, D = x.shape
    return pl.pallas_call(
        functools.partial(_attn_block_kernel, num_heads=num_heads),
        out_shape=jax.ShapeDtypeStruct((S, D), jnp.float32),
        grid=(1,),
        in_specs=[
            pl.BlockSpec((S, D), lambda i: (0, 0)),
            pl.BlockSpec((1, D), lambda i: (0, 0)),
            pl.BlockSpec((1, D), lambda i: (0, 0)),
            pl.BlockSpec((D, 3 * D), lambda i: (0, 0)),
            pl.BlockSpec((1, 3 * D), lambda i: (0, 0)),
            pl.BlockSpec((D, D), lambda i: (0, 0)),
            pl.BlockSpec((1, D), lambda i: (0, 0)),
        ],
        out_specs=pl.BlockSpec((S, D), lambda i: (0, 0)),
        compiler_params=pltpu.CompilerParams(dimension_semantics=("arbitrary",)),
    )(x, p["ln1_g"], p["ln1_b"], p["qkv_w"], p["qkv_b"], p["proj_w"], p["proj_b"])


def mlp_block_pallas(x, p):
    S, D = x.shape
    Hm = p["fc1_w"].shape[1]
    TM = _row_tile(S)
    return pl.pallas_call(
        _mlp_block_kernel,
        out_shape=jax.ShapeDtypeStruct((S, D), jnp.float32),
        grid=(pl.cdiv(S, TM),),
        in_specs=[
            pl.BlockSpec((TM, D), lambda i: (i, 0)),
            pl.BlockSpec((1, D), lambda i: (0, 0)),
            pl.BlockSpec((1, D), lambda i: (0, 0)),
            pl.BlockSpec((D, Hm), lambda i: (0, 0)),
            pl.BlockSpec((1, Hm), lambda i: (0, 0)),
            pl.BlockSpec((Hm, D), lambda i: (0, 0)),
            pl.BlockSpec((1, D), lambda i: (0, 0)),
        ],
        out_specs=pl.BlockSpec((TM, D), lambda i: (i, 0)),
        compiler_params=pltpu.CompilerParams(dimension_semantics=("parallel",)),
    )(x, p["ln2_g"], p["ln2_b"], p["fc1_w"], p["fc1_b"], p["fc2_w"], p["fc2_b"])


def final_head_pallas(x, norm_g, norm_b, head_w, head_b):
    S, D = x.shape
    C = head_w.shape[1]
    TM = _row_tile(S)
    return pl.pallas_call(
        _final_head_kernel,
        out_shape=jax.ShapeDtypeStruct((S, C), jnp.float32),
        grid=(pl.cdiv(S, TM),),
        in_specs=[
            pl.BlockSpec((TM, D), lambda i: (i, 0)),
            pl.BlockSpec((1, D), lambda i: (0, 0)),
            pl.BlockSpec((1, D), lambda i: (0, 0)),
            pl.BlockSpec((D, C), lambda i: (0, 0)),
            pl.BlockSpec((1, C), lambda i: (0, 0)),
        ],
        out_specs=pl.BlockSpec((TM, C), lambda i: (i, 0)),
        compiler_params=pltpu.CompilerParams(dimension_semantics=("parallel",)),
    )(x, norm_g, norm_b, head_w, head_b)


# ----------------------------------------------------------------------------- #
# Model: parameter init + forward
# ----------------------------------------------------------------------------- #
def init_params(key, in_dims, num_hidden, attr_num, embed_dim, num_classes,
                heads, depth=3, mlp_ratio=4):
    keys = iter(jax.random.split(key, 128))
    bf = jnp.bfloat16

    def nrm(shape, std=0.02, dtype=jnp.float32):
        return (jax.random.normal(next(keys), shape, jnp.float32) * std).astype(dtype)

    hidden = int(embed_dim * mlp_ratio)
    params = {
        # matmul weights stored bf16 (MXU fast path); biases / LN params f32
        "fc": [(nrm((d, num_hidden), dtype=bf), nrm((1, num_hidden))) for d in in_dims],
        "patch_w": nrm((num_hidden, embed_dim), dtype=bf),
        "patch_b": jnp.zeros((1, embed_dim), jnp.float32),
        "cls_token": nrm((1, embed_dim)),
        "pos_embed": nrm((attr_num + 1, embed_dim)),
        "norm_g": jnp.ones((1, embed_dim), jnp.float32),
        "norm_b": jnp.zeros((1, embed_dim), jnp.float32),
        "head_w": nrm((embed_dim, num_classes), dtype=bf),
        "head_b": jnp.zeros((1, num_classes), jnp.float32),
        "blocks": [],
    }
    for _ in range(depth):
        params["blocks"].append(dict(
            ln1_g=jnp.ones((1, embed_dim), jnp.float32),
            ln1_b=jnp.zeros((1, embed_dim), jnp.float32),
            qkv_w=nrm((embed_dim, 3 * embed_dim), dtype=bf),
            qkv_b=jnp.zeros((1, 3 * embed_dim), jnp.float32),
            proj_w=nrm((embed_dim, embed_dim), dtype=bf),
            proj_b=jnp.zeros((1, embed_dim), jnp.float32),
            ln2_g=jnp.ones((1, embed_dim), jnp.float32),
            ln2_b=jnp.zeros((1, embed_dim), jnp.float32),
            fc1_w=nrm((embed_dim, hidden), dtype=bf),
            fc1_b=jnp.zeros((1, hidden), jnp.float32),
            fc2_w=nrm((hidden, embed_dim), dtype=bf),
            fc2_b=jnp.zeros((1, embed_dim), jnp.float32),
        ))
    return params


def mygat_forward(params, features_list, node_type_src, num_heads):
    node_counts = [f.shape[0] for f in features_list]
    D = params["patch_w"].shape[1]
    N = sum(node_counts)
    # pos_embed is (attr_num + 1, D); must match total node count
    assert params["pos_embed"].shape[0] == N + 1, "attr_num must equal sum of node counts"
    assert D % num_heads == 0

    # Only the source node type contributes: the reference zeroes every other
    # type's projection, and zeros @ patch_w == 0, so non-source tokens reduce
    # to patch_b (+ pos_embed).  This skips k-1 projection kernels entirely.
    fc_w, fc_b = params["fc"][node_type_src]
    src_tok = src_embed_pallas(features_list[node_type_src], fc_w, fc_b,
                               params["patch_w"], params["patch_b"])     # [n_src, D]

    rows = []
    for i, cnt in enumerate(node_counts):
        if i == node_type_src:
            rows.append(src_tok)
        else:
            rows.append(jnp.broadcast_to(params["patch_b"], (cnt, D)))
    x = jnp.concatenate([params["cls_token"]] + rows, axis=0) + params["pos_embed"]

    for blk in params["blocks"]:
        x = attn_block_pallas(x, blk, num_heads)   # x += Proj(MHSA(LN1(x)))
        x = mlp_block_pallas(x, blk)               # x += MLP(LN2(x))

    logits = final_head_pallas(x, params["norm_g"], params["norm_b"],
                               params["head_w"], params["head_b"])       # [N+1, C]

    loss_ac = jnp.array(0, jnp.int32)
    # logits.squeeze()[1:]  -> drop the cls token, keep per-node logits
    return logits[1:], loss_ac


# ----------------------------------------------------------------------------- #
# Demo
# ----------------------------------------------------------------------------- #
if __name__ == "__main__":
    key = jax.random.PRNGKey(0)

    # small synthetic configuration
    in_dims = [12, 20]          # two node types
    node_counts = [8, 8]        # 8 nodes per type -> 16 tokens (+1 cls)
    num_hidden = 32
    embed_dim = 64
    heads = 4
    num_classes = 5
    node_type_src = 0
    attr_num = sum(node_counts)

    kf, k0, k1 = jax.random.split(key, 3)
    features_list = [
        jax.random.normal(k0, (node_counts[0], in_dims[0]), jnp.float32),
        jax.random.normal(k1, (node_counts[1], in_dims[1]), jnp.float32),
    ]

    params = init_params(kf, in_dims, num_hidden, attr_num, embed_dim,
                         num_classes, heads, depth=3)

    logits, loss_ac = mygat_forward(params, features_list, node_type_src, heads)
    logits = jax.block_until_ready(logits)
    loss_ac = jax.block_until_ready(loss_ac)

    assert logits.shape == (attr_num, num_classes), logits.shape
    assert jnp.all(jnp.isfinite(logits))
    print("KERNEL_OK")
</pallas_src>

<mosaic_0001>
module attributes {stable_mosaic.version = 11 : i64} {
  func.func @_src_embed_kernel(%arg0: i32, %arg1: memref<8x12xf32, #tpu.memory_space<vmem>>, %arg2: memref<12x32xbf16, #tpu.memory_space<vmem>>, %arg3: memref<1x32xf32, #tpu.memory_space<vmem>>, %arg4: memref<32x64xbf16, #tpu.memory_space<vmem>>, %arg5: memref<1x64xf32, #tpu.memory_space<vmem>>, %arg6: memref<8x64xf32, #tpu.memory_space<vmem>>) attributes {dimension_semantics = [#tpu.dimension_semantics<parallel>], iteration_bounds = array<i64: 1>, scalar_prefetch = 0 : i64, scratch_operands = 0 : i64, tpu.core_type = #tpu.core_type<tc>, window_params = [{transform_indices = @transform_0, window_bounds = array<i64: 8, 12>}, {pipeline_mode = #tpu.pipeline_mode<synchronous>, transform_indices = @transform_1, window_bounds = array<i64: 12, 32>}, {pipeline_mode = #tpu.pipeline_mode<synchronous>, transform_indices = @transform_2, window_bounds = array<i64: 1, 32>}, {pipeline_mode = #tpu.pipeline_mode<synchronous>, transform_indices = @transform_3, window_bounds = array<i64: 32, 64>}, {pipeline_mode = #tpu.pipeline_mode<synchronous>, transform_indices = @transform_4, window_bounds = array<i64: 1, 64>}, {transform_indices = @transform_5, window_bounds = array<i64: 8, 64>}]} {
    %c0 = arith.constant 0 : index
    %c0_0 = arith.constant 0 : index
    %0 = vector.load %arg1[%c0, %c0_0] : memref<8x12xf32, #tpu.memory_space<vmem>>, vector<8x12xf32>
    %1 = arith.truncf %0 : vector<8x12xf32> to vector<8x12xbf16>
    %c0_1 = arith.constant 0 : index
    %c0_2 = arith.constant 0 : index
    %2 = vector.load %arg2[%c0_1, %c0_2] : memref<12x32xbf16, #tpu.memory_space<vmem>>, vector<12x32xbf16>
    %cst = arith.constant dense<0.000000e+00> : vector<8x32xf32>
    %3 = tpu.matmul %1, %2, %cst {dimension_numbers = #tpu.dot_dimension_numbers<[1], [0], [0], [1], [0, 0, 1, 1], [], []>} : vector<8x12xbf16>, vector<12x32xbf16>, vector<8x32xf32> -> vector<8x32xf32>
    %c0_3 = arith.constant 0 : index
    %c0_4 = arith.constant 0 : index
    %4 = vector.load %arg3[%c0_3, %c0_4] : memref<1x32xf32, #tpu.memory_space<vmem>>, vector<1x32xf32>
    %5 = vector.broadcast %4 : vector<1x32xf32> to vector<8x32xf32>
    %6 = arith.addf %3, %5 : vector<8x32xf32>
    %7 = arith.truncf %6 : vector<8x32xf32> to vector<8x32xbf16>
    %c0_5 = arith.constant 0 : index
    %c0_6 = arith.constant 0 : index
    %8 = vector.load %arg4[%c0_5, %c0_6] : memref<32x64xbf16, #tpu.memory_space<vmem>>, vector<32x64xbf16>
    %cst_7 = arith.constant dense<0.000000e+00> : vector<8x64xf32>
    %9 = tpu.matmul %7, %8, %cst_7 {dimension_numbers = #tpu.dot_dimension_numbers<[1], [0], [0], [1], [0, 0, 1, 1], [], []>} : vector<8x32xbf16>, vector<32x64xbf16>, vector<8x64xf32> -> vector<8x64xf32>
    %c0_8 = arith.constant 0 : index
    %c0_9 = arith.constant 0 : index
    %10 = vector.load %arg5[%c0_8, %c0_9] : memref<1x64xf32, #tpu.memory_space<vmem>>, vector<1x64xf32>
    %11 = vector.broadcast %10 : vector<1x64xf32> to vector<8x64xf32>
    %12 = arith.addf %9, %11 : vector<8x64xf32>
    %c0_10 = arith.constant 0 : index
    %c0_11 = arith.constant 0 : index
    %13 = vector.load %arg6[%c0_10, %c0_11] : memref<8x64xf32, #tpu.memory_space<vmem>>, vector<8x64xf32>
    tpu.vector_store %arg6[%c0_10, %c0_11], %12 {strides = array<i32>} : memref<8x64xf32, #tpu.memory_space<vmem>>, vector<8x64xf32>,
    return
  }
  func.func @transform_0(%arg0: i32) -> (i32, i32) {
    %c0_i32 = arith.constant 0 : i32
    %c0_i32_0 = arith.constant 0 : i32
    return %arg0, %c0_i32 : i32, i32
  }
  func.func @transform_1(%arg0: i32) -> (i32, i32) {
    %c0_i32 = arith.constant 0 : i32
    %c0_i32_0 = arith.constant 0 : i32
    %c0_i32_1 = arith.constant 0 : i32
    return %c0_i32, %c0_i32_0 : i32, i32
  }
  func.func @transform_2(%arg0: i32) -> (i32, i32) {
    %c0_i32 = arith.constant 0 : i32
    %c0_i32_0 = arith.constant 0 : i32
    %c0_i32_1 = arith.constant 0 : i32
    return %c0_i32, %c0_i32_0 : i32, i32
  }
  func.func @transform_3(%arg0: i32) -> (i32, i32) {
    %c0_i32 = arith.constant 0 : i32
    %c0_i32_0 = arith.constant 0 : i32
    %c0_i32_1 = arith.constant 0 : i32
    return %c0_i32, %c0_i32_0 : i32, i32
  }
  func.func @transform_4(%arg0: i32) -> (i32, i32) {
    %c0_i32 = arith.constant 0 : i32
    %c0_i32_0 = arith.constant 0 : i32
    %c0_i32_1 = arith.constant 0 : i32
    return %c0_i32, %c0_i32_0 : i32, i32
  }
  func.func @transform_5(%arg0: i32) -> (i32, i32) {
    %c0_i32 = arith.constant 0 : i32
    %c0_i32_0 = arith.constant 0 : i32
    return %arg0, %c0_i32 : i32, i32
  }
}

</mosaic_0001>

<llo_original>
// kernel: tpu_custom_call.1
$region0: #{tpu_custom_call.1}
  #allocation0 [shape = 'u32[]', space=smem, size = 0x4, offset = 0x4, fixed_abs, tag = 'smem constant byte address 0x4 - core index']
  #allocation1 [shape = 'u32[144,128]{1,0:T(1,128)}', space=vmem, size = 0x12000, scoped, tag = 'internal scratch']
  %s0 = inlined_call_operand.hbm [shape: f32[8,12], index: 0, kind: input, shape index: {}]
  %s1 = inlined_call_operand.hbm [shape: bf16[12,32], index: 1, kind: input, shape index: {}]
  %s2 = inlined_call_operand.vmem [shape: f32[1,32], index: 2, kind: input, shape index: {}]
  %s3 = inlined_call_operand.hbm [shape: bf16[32,64], index: 3, kind: input, shape index: {}]
  %s4 = inlined_call_operand.vmem [shape: f32[1,64], index: 4, kind: input, shape index: {}]
  %s5 = inlined_call_operand.hbm [shape: f32[8,64], index: 5, kind: output, shape index: {}]
  %s6 = sld [smem:[#allocation0]]
  $region42: #{tpu_custom_call.1} parent=0
    _
  %s8 = ssub.s32 1, %s6
  %s9 = scalar_select 0, %s8, %s6
  $region1: #{tpu_custom_call.1} parent=0
    #allocation2 [shape = 'u8[4096]{0}', space=vmem, size = 0x1000, scoped, tag = 'input window, operand 0, single buffered']
    #allocation3 [shape = 's32[1]{0}', space=sflag, size = 0x4, scoped, tag = 'scoped memory for tpu_custom_call.1']
    #allocation4 [shape = 's32[1]{0}', space=sflag, size = 0x4, scoped, tag = 'scoped memory for tpu_custom_call.1']
    #allocation5 [shape = 'u8[4096]{0}', space=vmem, size = 0x1000, scoped, tag = 'input window, operand 1, single buffered']
    #allocation6 [shape = 's32[1]{0}', space=sflag, size = 0x4, scoped, tag = 'scoped memory for tpu_custom_call.1']
    #allocation7 [shape = 'u8[8192]{0}', space=vmem, size = 0x2000, scoped, tag = 'input window, operand 3, single buffered']
    #allocation8 [shape = 'u8[4096]{0}', space=vmem, size = 0x1000, scoped, tag = 'output window, operand 0, single buffered']
    %10 = vsyncpa [#allocation3], 0
    %11 = vsyncpa [#allocation6], 0
    %12 = vsyncpa [#allocation4], 0
    // Predicated region
    $region2: #{tpu_custom_call.1} parent=1 // pred_check
      _
    $region3: #{tpu_custom_call.1} parent=1 // pred_check_branch
      %14 = sbr.rel (0) target = $region5
    $region4: #{tpu_custom_call.1} parent=1 // pred_region
      %s16 = ssub.s32 128, 128
      %17 = vsyncadd [#allocation3], %s16
      %s19 = sshll.u32 [#allocation2], 4
      %s20 = int_to_ptr.vmem [resolvable:$true] %s19
      %22 = dma.hbm_to_vmem [thread:$0]  %s0, 128, %s20, [#allocation3]
    $region5: #{tpu_custom_call.1} parent=1 // pred_fallthru
      _
    // Predicated region
    $region6: #{tpu_custom_call.1} parent=1 // pred_check
      _
    $region7: #{tpu_custom_call.1} parent=1 // pred_check_branch
      %24 = sbr.rel (0) target = $region9
    $region8: #{tpu_custom_call.1} parent=1 // pred_region
      %s26 = ssub.s32 128, 128
      %27 = vsyncadd [#allocation6], %s26
      %s28 = sshll.u32 [#allocation5], 4
      %s29 = int_to_ptr.vmem [resolvable:$true] %s28
      %34 = dma.hbm_to_vmem [thread:$0]  %s1, 128, %s29, [#allocation6], 64, 64, 4
    $region9: #{tpu_custom_call.1} parent=1 // pred_fallthru
      _
    // Predicated region
    $region10: #{tpu_custom_call.1} parent=1 // pred_check
      _
    $region11: #{tpu_custom_call.1} parent=1 // pred_check_branch
      %36 = sbr.rel (0) target = $region13
    $region12: #{tpu_custom_call.1} parent=1 // pred_region
      _
    $region13: #{tpu_custom_call.1} parent=1 // pred_fallthru
      _
    // Predicated region
    $region14: #{tpu_custom_call.1} parent=1 // pred_check
      _
    $region15: #{tpu_custom_call.1} parent=1 // pred_check_branch
      %38 = sbr.rel (0) target = $region17
    $region16: #{tpu_custom_call.1} parent=1 // pred_region
      %s40 = ssub.s32 256, 256
      %41 = vsyncadd [#allocation6], %s40
      %s42 = sshll.u32 [#allocation7], 4
      %s43 = int_to_ptr.vmem [resolvable:$true] %s42
      %48 = dma.hbm_to_vmem [thread:$0]  %s3, 256, %s43, [#allocation6], 64, 64, 4
    $region17: #{tpu_custom_call.1} parent=1 // pred_fallthru
      _
    // Predicated region
    $region18: #{tpu_custom_call.1} parent=1 // pred_check
      _
    $region19: #{tpu_custom_call.1} parent=1 // pred_check_branch
      %50 = sbr.rel (0) target = $region21
    $region20: #{tpu_custom_call.1} parent=1 // pred_region
      _
    $region21: #{tpu_custom_call.1} parent=1 // pred_fallthru
      _
    // Predicated region
    $region22: #{tpu_custom_call.1} parent=1 // pred_check
      _
    $region23: #{tpu_custom_call.1} parent=1 // pred_check_branch
      %52 = sbr.rel (0) target = $region25
    $region24: #{tpu_custom_call.1} parent=1 // pred_region
      %53 = dma.done [#allocation3], 128
    $region25: #{tpu_custom_call.1} parent=1 // pred_fallthru
      _
    // Predicated region
    $region26: #{tpu_custom_call.1} parent=1 // pred_check
      _
    $region27: #{tpu_custom_call.1} parent=1 // pred_check_branch
      %55 = sbr.rel (0) target = $region29
    $region28: #{tpu_custom_call.1} parent=1 // pred_region
      %56 = dma.done [#allocation6], 128
    $region29: #{tpu_custom_call.1} parent=1 // pred_fallthru
      _
    // Predicated region
    $region30: #{tpu_custom_call.1} parent=1 // pred_check
      _
    $region31: #{tpu_custom_call.1} parent=1 // pred_check_branch
      %58 = sbr.rel (0) target = $region33
    $region32: #{tpu_custom_call.1} parent=1 // pred_region
      %59 = dma.done [#allocation6], 256
    $region33: #{tpu_custom_call.1} parent=1 // pred_fallthru
      _
    %v61 = vld [vmem:[#allocation2] sm:$0xff]
    %v62 = vpack.c.bf16 %v61, %v61
    %v63 = vld [vmem:[#allocation5] sm:$0xf]
    %v64 = vld [vmem:[#allocation5 + $0x4] sm:$0x3]
    %v65 = vld [vmem:[%s2] sm:$0x1]
    %v67 = vlaneseq
    %v68 = vshrl.u32 %v67, 7
    %v69 = vsub.s32 0, %v68
    %v70 = vrot.slane %v65, %v69
    %v74 = vunpack.c.l.b16 %v63
    %v75 = vunpack.c.l.b16 %v64
    %v76 = vpack.c.b16 %v75, %v74
    %vm77 = vcmask 97280
    %v79 = vsel %vm77, %v62, 0
    %vm81 = vcmask 1045504
    %v83 = vsel %vm81, %v76, 0
    %85 = vmatprep.subr.bf16.mxu0 0
    %86 = vmatpush1.bf16.msra.mxu0 0
    %87 = vmatprep.subr.bf16.mxu0 0
    %88 = vmatpush1.bf16.msra.mxu0 0
    %89 = vmatprep.subr.bf16.mxu0 0
    %90 = vmatpush1.bf16.msra.mxu0 0
    %91 = vmatprep.subr.bf16.mxu0 0
    %92 = vmatpush1.bf16.msra.mxu0 0
    %93 = vmatprep.subr.bf16.mxu0 0
    %94 = vmatpush1.bf16.msra.mxu0 0
    %95 = vmatprep.subr.bf16.mxu0 0
    %96 = vmatpush1.bf16.msra.mxu0 0
    %97 = vmatprep.subr.bf16.mxu0 0
    %98 = vmatpush1.bf16.msra.mxu0 0
    %99 = vmatprep.subr.bf16.mxu0 0
    %100 = vmatpush1.bf16.msra.mxu0 %v83
    %101 = vmatprep.subr.bf16.mxu0 0
    %102 = vmatpush2.bf16.msra.mxu0 0
    %103 = vmatprep.subr.bf16.mxu0 0
    %104 = vmatpush2.bf16.msra.mxu0 0
    %105 = vmatprep.subr.bf16.mxu0 0
    %106 = vmatpush2.bf16.msra.mxu0 0
    %107 = vmatprep.subr.bf16.mxu0 0
    %108 = vmatpush2.bf16.msra.mxu0 0
    %109 = vmatprep.subr.bf16.mxu0 0
    %110 = vmatpush2.bf16.msra.mxu0 0
    %111 = vmatprep.subr.bf16.mxu0 0
    %112 = vmatpush2.bf16.msra.mxu0 0
    %113 = vmatprep.subr.bf16.mxu0 0
    %114 = vmatpush2.bf16.msra.mxu0 0
    %115 = vmatprep.subr.bf16.mxu0 0
    %116 = vmatpush2.bf16.msra.mxu0 0
    %117 = vmatprep.mubr.bf16.mxu0 0
    %118 = vmatmul.mubr.bf16.gmra.mxu0 %v79
    %v119 = vpop.f32.mrf.mxu0
    %v120 = vadd.f32 %v70, %v119
    %v121 = vpop.f32.mrf.mxu0
    %v122 = vpop.f32.mrf.mxu0
    %v123 = vpop.f32.mrf.mxu0
    %124 = vdwg.mxu0
    %v125 = vpack.c.bf16 %v120, %v120
    %v126 = vld [vmem:[#allocation7] sm:$0xf]
    %v127 = vld [vmem:[#allocation7 + $0x4] sm:$0xf]
    %v128 = vld [vmem:[#allocation7 + $0x8] sm:$0xf]
    %v129 = vld [vmem:[#allocation7 + $0xc] sm:$0xf]
    %v130 = vld [vmem:[%s4] sm:$0x1]
    %v132 = vlaneseq
    %v133 = vshrl.u32 %v132, 7
    %v134 = vsub.s32 0, %v133
    %v135 = vrot.slane %v130, %v134
    %v141 = vunpack.c.l.b16 %v126
    %v142 = vunpack.c.l.b16 %v127
    %v143 = vunpack.c.l.b16 %v128
    %v144 = vunpack.c.l.b16 %v129
    %v145 = vpack.c.b16 %v142, %v141
    %v146 = vpack.c.b16 %v144, %v143
    %vm149 = vcmask 261120
    %v151 = vsel %vm149, %v125, 0
    %153 = vmatprep.subr.bf16.mxu0 0
    %154 = vmatpush1.bf16.msra.mxu0 0
    %155 = vmatprep.subr.bf16.mxu0 0
    %156 = vmatpush1.bf16.msra.mxu0 0
    %157 = vmatprep.subr.bf16.mxu0 0
    %158 = vmatpush1.bf16.msra.mxu0 0
    %159 = vmatprep.subr.bf16.mxu0 0
    %160 = vmatpush1.bf16.msra.mxu0 0
    %161 = vmatprep.subr.bf16.mxu0 0
    %162 = vmatpush1.bf16.msra.mxu0 0
    %163 = vmatprep.subr.bf16.mxu0 0
    %164 = vmatpush1.bf16.msra.mxu0 0
    %165 = vmatprep.subr.bf16.mxu0 0
    %166 = vmatpush1.bf16.msra.mxu0 %v146
    %167 = vmatprep.subr.bf16.mxu0 0
    %168 = vmatpush1.bf16.msra.mxu0 %v145
    %169 = vmatprep.subr.bf16.mxu0 0
    %170 = vmatpush2.bf16.msra.mxu0 0
    %171 = vmatprep.subr.bf16.mxu0 0
    %172 = vmatpush2.bf16.msra.mxu0 0
    %173 = vmatprep.subr.bf16.mxu0 0
    %174 = vmatpush2.bf16.msra.mxu0 0
    %175 = vmatprep.subr.bf16.mxu0 0
    %176 = vmatpush2.bf16.msra.mxu0 0
    %177 = vmatprep.subr.bf16.mxu0 0
    %178 = vmatpush2.bf16.msra.mxu0 0
    %179 = vmatprep.subr.bf16.mxu0 0
    %180 = vmatpush2.bf16.msra.mxu0 0
    %181 = vmatprep.subr.bf16.mxu0 0
    %182 = vmatpush2.bf16.msra.mxu0 0
    %183 = vmatprep.subr.bf16.mxu0 0
    %184 = vmatpush2.bf16.msra.mxu0 0
    %185 = vmatprep.mubr.bf16.mxu0 0
    %186 = vmatmul.mubr.bf16.gmra.mxu0 %v151
    %v187 = vpop.f32.mrf.mxu0
    %v188 = vadd.f32 %v135, %v187
    %v189 = vpop.f32.mrf.mxu0
    %v190 = vpop.f32.mrf.mxu0
    %v191 = vpop.f32.mrf.mxu0
    %192 = vdwg.mxu0
    %vm193 = vcmask 523264
    %194 = vst.msk [vmem:[#allocation8] sm:$0xff] %vm193, %v188
    // Predicated region
    $region34: #{tpu_custom_call.1} parent=1 // pred_check
      _
    $region35: #{tpu_custom_call.1} parent=1 // pred_check_branch
      %196 = sbr.rel (0) target = $region37
    $region36: #{tpu_custom_call.1} parent=1 // pred_region
      %s198 = ssub.s32 128, 128
      %199 = vsyncadd [#allocation4], %s198
      %s201 = sshll.u32 [#allocation8], 4
      %s202 = int_to_ptr.vmem [resolvable:$true] %s201
      %204 = dma.vmem_to_hbm [thread:$0]  %s202, 128, %s5, [#allocation4]
    $region37: #{tpu_custom_call.1} parent=1 // pred_fallthru
      _
    // Predicated region
    $region38: #{tpu_custom_call.1} parent=1 // pred_check
      _
    $region39: #{tpu_custom_call.1} parent=1 // pred_check_branch
      %206 = sbr.rel (0) target = $region41
    $region40: #{tpu_custom_call.1} parent=1 // pred_region
      %207 = dma.done [#allocation4], 128
    $region41: #{tpu_custom_call.1} parent=1 // pred_fallthru
      _
    %208 = vsyncpa [#allocation3], 1
    %209 = vsyncpa [#allocation6], 1
    %210 = vsyncpa [#allocation4], 1

</llo_original>
